<compile_context>
chip_gen: v7x
topology: tpu7x:2x2x1
jax: 0.10.0
libtpu: 0.0.40
codegen_flags: <defaults>
</compile_context>

<pallas_src>
import functools

import jax
import jax.numpy as jnp
from jax.experimental import pallas as pl
from jax.experimental.pallas import tpu as pltpu


def _gated_tanh_kernel(x_ref, ctx_ref, w_spec_ref, b_spec_ref,
                       w_txt_ref, b_txt_ref, o_ref, *, matmul_dtype):
    # x_ref, ctx_ref : [1, C, TN]   one batch element, one time tile (native dtype)
    # w_*_ref        : [C_out, C]   resident across grid steps (matmul dtype)
    # b_*_ref        : [C_out, 1]   f32, broadcast over lanes (time)
    # o_ref          : [1, C_out, TN]
    # Cast to the MXU dtype in VMEM (no extra HBM pass in the wrapper).
    x = x_ref[0].astype(matmul_dtype)      # [C, TN]
    ctx = ctx_ref[0].astype(matmul_dtype)  # [C, TN]

    spec = jnp.dot(w_spec_ref[...], x, preferred_element_type=jnp.float32)
    spec = spec + b_spec_ref[...]
    txt = jnp.dot(w_txt_ref[...], ctx, preferred_element_type=jnp.float32)
    txt = txt + b_txt_ref[...]

    # Elementwise math in f32 (v5e VPU/EUP have no bf16 support).
    # sigmoid(s) == 0.5 * (1 + tanh(0.5 * s)): two native EUP tanh per output.
    gate = 0.5 * (1.0 + jnp.tanh(0.5 * spec))
    # Note: on a partial last time tile the pad lanes flow through tanh of
    # uninitialized VMEM; that is benign on TPU (no FP traps) and the pad
    # lanes are never stored. Do not turn this into a reduction.
    o_ref[0] = (gate * jnp.tanh(txt)).astype(o_ref.dtype)


def _weight_norm_1x1(v, g):
    """Effective weight of torch.nn.utils.weight_norm(Conv1d(k=1)), dim=0.

    v : [C_out, C_in, 1]   direction
    g : [C_out, 1, 1]      magnitude
    returns effective kernel [C_out, C_in]

    No epsilon, matching torch.nn.utils.weight_norm (zero-norm v divides by 0).
    """
    norm = jnp.sqrt(jnp.sum(v * v, axis=(1, 2), keepdims=True))  # [C_out,1,1]
    w = g * v / norm
    return w[:, :, 0]  # [C_out, C_in]


def _pick_time_tile(T, C, in_itemsize, budget_bytes=2 << 20):
    """Largest multiple-of-128 time tile keeping one input block <= budget.

    Grows to 4096 lanes for small C, floors at 512 when T allows (bigger
    tiles amortize per-grid-step overhead and lengthen strided HBM bursts).
    """
    if T <= 512:
        return T  # single full-T block: block dims == array dims, any T legal
    tn = 4096
    while tn > 512 and C * tn * in_itemsize > budget_bytes:
        tn //= 2
    if tn >= T:
        return T
    return tn     # multiple of 128; partial last block handled by Pallas


def _round_up(n, m):
    return ((n + m - 1) // m) * m


@functools.partial(jax.jit,
                   static_argnames=("matmul_dtype", "out_dtype", "time_tile"))
def gated_tanh_unit(x, context_attn, params, *, matmul_dtype=jnp.bfloat16,
                    out_dtype=None, time_tile=None):
    """x, context_attn: [B, C, T] (NCT, like PyTorch). Returns [B, C//2, T].

    matmul_dtype=bfloat16 quantizes activations and the post-weight-norm
    kernels on the MXU (f32 accumulation); pass float32 for bit-near-PyTorch
    results. out_dtype=bfloat16 halves output writeback when acceptable.
    """
    B, C, T = x.shape
    C_out = C // 2
    out_dtype = x.dtype if out_dtype is None else out_dtype

    # Effective weight-norm kernels (tiny; computed once per jitted call).
    w_spec = _weight_norm_1x1(params["spec_v"], params["spec_g"])  # [C_out, C]
    w_txt = _weight_norm_1x1(params["txt_v"], params["txt_g"])     # [C_out, C]

    ws = w_spec.astype(matmul_dtype)
    wt = w_txt.astype(matmul_dtype)
    bs = params["spec_b"].astype(jnp.float32).reshape(C_out, 1)
    bt = params["txt_b"].astype(jnp.float32).reshape(C_out, 1)

    in_item = jnp.dtype(x.dtype).itemsize
    w_item = jnp.dtype(matmul_dtype).itemsize
    out_item = jnp.dtype(out_dtype).itemsize

    tn = time_tile if time_tile is not None else _pick_time_tile(T, C, in_item)
    n_t = pl.cdiv(T, tn)

    # VMEM budget: actual double-buffered footprint + headroom (never the full
    # 64 MiB of a v7x core). Floor at 32 MiB (== v6e/v7x scoped default).
    c_pad, co_pad, tn_pad = _round_up(C, 8), _round_up(C_out, 8), _round_up(tn, 128)
    act_vmem = 2 * 2 * c_pad * tn_pad * in_item            # x + ctx, double buffered
    out_vmem = 2 * co_pad * tn_pad * out_item              # output, double buffered
    wgt_vmem = 2 * 2 * co_pad * _round_up(C, 128) * w_item  # 2 resident weights, 2 bufs
    bias_vmem = 2 * 2 * co_pad * 128 * 4
    body_vmem = 2 * co_pad * tn_pad * 4 + 2 * c_pad * tn_pad * w_item  # pre-acts + casts
    vmem_limit = int(max(32 << 20,
                         act_vmem + out_vmem + wgt_vmem + bias_vmem
                         + body_vmem + (4 << 20)))

    # Time-tile axis first so megacore sharding (v7x) splits the big axis
    # even when B == 1; both axes are independent.
    act_spec = pl.BlockSpec((1, C, tn), lambda t, b: (b, 0, t))

    def resident(shape):
        # Constant index_map -> block stays resident in VMEM across grid steps.
        return pl.BlockSpec(shape, lambda t, b: (0, 0))

    out = pl.pallas_call(
        functools.partial(_gated_tanh_kernel, matmul_dtype=matmul_dtype),
        out_shape=jax.ShapeDtypeStruct((B, C_out, T), out_dtype),
        grid=(n_t, B),
        in_specs=[
            act_spec,                    # x (native dtype)
            act_spec,                    # context_attn (native dtype)
            resident((C_out, C)),        # w_spec
            resident((C_out, 1)),        # b_spec
            resident((C_out, C)),        # w_txt
            resident((C_out, 1)),        # b_txt
        ],
        out_specs=pl.BlockSpec((1, C_out, tn), lambda t, b: (b, 0, t)),
        compiler_params=pltpu.CompilerParams(
            dimension_semantics=("parallel", "parallel"),
            vmem_limit_bytes=vmem_limit,
        ),
    )(x, context_attn, ws, bs, wt, bt)
    return out


def init_params(key, channels):
    """Deterministic init matching the shapes of the PyTorch module."""
    c_out = channels // 2
    ks = jax.random.split(key, 6)
    spec_v = jax.random.normal(ks[0], (c_out, channels, 1), jnp.float32) * 0.1
    spec_g = jax.random.normal(ks[1], (c_out, 1, 1), jnp.float32) * 0.1 + 1.0
    spec_b = jax.random.normal(ks[2], (c_out,), jnp.float32) * 0.1
    txt_v = jax.random.normal(ks[3], (c_out, channels, 1), jnp.float32) * 0.1
    txt_g = jax.random.normal(ks[4], (c_out, 1, 1), jnp.float32) * 0.1 + 1.0
    txt_b = jax.random.normal(ks[5], (c_out,), jnp.float32) * 0.1
    return dict(spec_v=spec_v, spec_g=spec_g, spec_b=spec_b,
                txt_v=txt_v, txt_g=txt_g, txt_b=txt_b)


def _reference(x, ctx, params, matmul_dtype=jnp.float32):
    """Pure-JAX reference of the PyTorch forward (optionally with the same
    narrow-dtype matmul inputs as the kernel)."""
    f32 = jnp.float32
    w_spec = _weight_norm_1x1(params["spec_v"], params["spec_g"])
    w_txt = _weight_norm_1x1(params["txt_v"], params["txt_g"])
    w_spec = w_spec.astype(matmul_dtype).astype(f32)
    w_txt = w_txt.astype(matmul_dtype).astype(f32)
    xr = x.astype(matmul_dtype).astype(f32)
    cr = ctx.astype(matmul_dtype).astype(f32)
    hi = jax.lax.Precision.HIGHEST
    spec = jnp.einsum("oc,bct->bot", w_spec, xr, precision=hi)
    spec = spec + params["spec_b"][None, :, None]
    txt = jnp.einsum("oc,bct->bot", w_txt, cr, precision=hi)
    txt = txt + params["txt_b"][None, :, None]
    return jax.nn.sigmoid(spec) * jnp.tanh(txt)


if __name__ == "__main__":
    key = jax.random.PRNGKey(0)
    k_x, k_c, k_p = jax.random.split(key, 3)

    # Small demo shapes (NCT, like the PyTorch Conv1d input).
    B, C, T = 2, 8, 16
    x = jax.random.normal(k_x, (B, C, T), jnp.float32)
    context_attn = jax.random.normal(k_c, (B, C, T), jnp.float32)
    params = init_params(k_p, C)

    # f32 matmul path: should match the exact PyTorch forward closely.
    out_f32 = jax.block_until_ready(
        gated_tanh_unit(x, context_attn, params, matmul_dtype=jnp.float32))
    ref_f32 = _reference(x, context_attn, params, matmul_dtype=jnp.float32)
    assert out_f32.shape == (B, C // 2, T)
    assert jnp.allclose(out_f32, ref_f32, atol=1e-4, rtol=1e-4), "f32 mismatch"

    # Default bf16 matmul path (f32 accumulation) vs a bf16-quantized reference.
    out_bf16 = jax.block_until_ready(gated_tanh_unit(x, context_attn, params))
    ref_bf16 = _reference(x, context_attn, params, matmul_dtype=jnp.bfloat16)
    assert out_bf16.dtype == x.dtype
    assert jnp.allclose(out_bf16, ref_bf16, atol=2e-3, rtol=2e-3), "bf16 mismatch"

    # bf16 output path (halves writeback for memory-bound consumers).
    out_bo = jax.block_until_ready(
        gated_tanh_unit(x, context_attn, params, out_dtype=jnp.bfloat16))
    assert out_bo.dtype == jnp.bfloat16
    assert jnp.allclose(out_bo.astype(jnp.float32), ref_bf16,
                        atol=2e-2, rtol=2e-2), "bf16-out mismatch"

    # Exercise the tiled multi-step grid path (3 full time tiles of 128).
    B2, C2, T2 = 2, 128, 384
    x2 = jax.random.normal(k_x, (B2, C2, T2), jnp.float32)
    c2 = jax.random.normal(k_c, (B2, C2, T2), jnp.float32)
    p2 = init_params(k_p, C2)
    out2 = jax.block_until_ready(gated_tanh_unit(x2, c2, p2, time_tile=128))
    ref2 = _reference(x2, c2, p2, matmul_dtype=jnp.bfloat16)
    assert out2.shape == (B2, C2 // 2, T2)
    assert jnp.allclose(out2, ref2, atol=5e-3, rtol=5e-3), "tiled mismatch"

    print("KERNEL_OK")
</pallas_src>

<mosaic_0001>
module attributes {stable_mosaic.version = 11 : i64} {
  func.func @_gated_tanh_kernel(%arg0: i32, %arg1: i32, %arg2: memref<1x8x16xf32, #tpu.memory_space<vmem>>, %arg3: memref<1x8x16xf32, #tpu.memory_space<vmem>>, %arg4: memref<4x8xf32, #tpu.memory_space<vmem>>, %arg5: memref<4x1xf32, #tpu.memory_space<vmem>>, %arg6: memref<4x8xf32, #tpu.memory_space<vmem>>, %arg7: memref<4x1xf32, #tpu.memory_space<vmem>>, %arg8: memref<1x4x16xf32, #tpu.memory_space<vmem>>) attributes {dimension_semantics = [#tpu.dimension_semantics<parallel>, #tpu.dimension_semantics<parallel>], iteration_bounds = array<i64: 1, 2>, scalar_prefetch = 0 : i64, scratch_operands = 0 : i64, tpu.core_type = #tpu.core_type<tc>, window_params = [{transform_indices = @transform_0, window_bounds = array<i64: 1, 8, 16>}, {transform_indices = @transform_1, window_bounds = array<i64: 1, 8, 16>}, {pipeline_mode = #tpu.pipeline_mode<synchronous>, transform_indices = @transform_2, window_bounds = array<i64: 4, 8>}, {pipeline_mode = #tpu.pipeline_mode<synchronous>, transform_indices = @transform_3, window_bounds = array<i64: 4, 1>}, {pipeline_mode = #tpu.pipeline_mode<synchronous>, transform_indices = @transform_4, window_bounds = array<i64: 4, 8>}, {pipeline_mode = #tpu.pipeline_mode<synchronous>, transform_indices = @transform_5, window_bounds = array<i64: 4, 1>}, {transform_indices = @transform_6, window_bounds = array<i64: 1, 4, 16>}]} {
    %c0 = arith.constant 0 : index
    %c0_0 = arith.constant 0 : index
    %c0_1 = arith.constant 0 : index
    %0 = vector.load %arg2[%c0, %c0_0, %c0_1] : memref<1x8x16xf32, #tpu.memory_space<vmem>>, vector<1x8x16xf32>
    %1 = vector.shape_cast %0 : vector<1x8x16xf32> to vector<8x16xf32>
    %c0_2 = arith.constant 0 : index
    %c0_3 = arith.constant 0 : index
    %c0_4 = arith.constant 0 : index
    %2 = vector.load %arg3[%c0_2, %c0_3, %c0_4] : memref<1x8x16xf32, #tpu.memory_space<vmem>>, vector<1x8x16xf32>
    %3 = vector.shape_cast %2 : vector<1x8x16xf32> to vector<8x16xf32>
    %c0_5 = arith.constant 0 : index
    %c0_6 = arith.constant 0 : index
    %4 = vector.load %arg4[%c0_5, %c0_6] : memref<4x8xf32, #tpu.memory_space<vmem>>, vector<4x8xf32>
    %cst = arith.constant dense<0.000000e+00> : vector<4x16xf32>
    %5 = tpu.matmul %4, %1, %cst {dimension_numbers = #tpu.dot_dimension_numbers<[1], [0], [0], [1], [0, 0, 1, 1], [], []>} : vector<4x8xf32>, vector<8x16xf32>, vector<4x16xf32> -> vector<4x16xf32>
    %c0_7 = arith.constant 0 : index
    %c0_8 = arith.constant 0 : index
    %6 = vector.load %arg5[%c0_7, %c0_8] : memref<4x1xf32, #tpu.memory_space<vmem>>, vector<4x1xf32>
    %7 = vector.broadcast %6 : vector<4x1xf32> to vector<4x16xf32>
    %8 = arith.addf %5, %7 : vector<4x16xf32>
    %c0_9 = arith.constant 0 : index
    %c0_10 = arith.constant 0 : index
    %9 = vector.load %arg6[%c0_9, %c0_10] : memref<4x8xf32, #tpu.memory_space<vmem>>, vector<4x8xf32>
    %cst_11 = arith.constant dense<0.000000e+00> : vector<4x16xf32>
    %10 = tpu.matmul %9, %3, %cst_11 {dimension_numbers = #tpu.dot_dimension_numbers<[1], [0], [0], [1], [0, 0, 1, 1], [], []>} : vector<4x8xf32>, vector<8x16xf32>, vector<4x16xf32> -> vector<4x16xf32>
    %c0_12 = arith.constant 0 : index
    %c0_13 = arith.constant 0 : index
    %11 = vector.load %arg7[%c0_12, %c0_13] : memref<4x1xf32, #tpu.memory_space<vmem>>, vector<4x1xf32>
    %12 = vector.broadcast %11 : vector<4x1xf32> to vector<4x16xf32>
    %13 = arith.addf %10, %12 : vector<4x16xf32>
    %cst_14 = arith.constant 5.000000e-01 : f32
    %14 = vector.broadcast %cst_14 : f32 to vector<4x16xf32>
    %15 = arith.mulf %14, %8 : vector<4x16xf32>
    %16 = math.tanh %15 : vector<4x16xf32>
    %cst_15 = arith.constant 1.000000e+00 : f32
    %17 = vector.broadcast %cst_15 : f32 to vector<4x16xf32>
    %18 = arith.addf %17, %16 : vector<4x16xf32>
    %cst_16 = arith.constant 5.000000e-01 : f32
    %19 = vector.broadcast %cst_16 : f32 to vector<4x16xf32>
    %20 = arith.mulf %19, %18 : vector<4x16xf32>
    %21 = math.tanh %13 : vector<4x16xf32>
    %22 = arith.mulf %20, %21 : vector<4x16xf32>
    %c0_17 = arith.constant 0 : index
    %c0_18 = arith.constant 0 : index
    %c0_19 = arith.constant 0 : index
    %23 = vector.load %arg8[%c0_17, %c0_18, %c0_19] : memref<1x4x16xf32, #tpu.memory_space<vmem>>, vector<1x4x16xf32>
    %24 = vector.shape_cast %23 : vector<1x4x16xf32> to vector<4x16xf32>
    %25 = vector.shape_cast %22 : vector<4x16xf32> to vector<1x4x16xf32>
    tpu.vector_store %arg8[%c0_17, %c0_18, %c0_19], %25 {strides = array<i32>} : memref<1x4x16xf32, #tpu.memory_space<vmem>>, vector<1x4x16xf32>,
    return
  }
  func.func @transform_0(%arg0: i32, %arg1: i32) -> (i32, i32, i32) {
    %c0_i32 = arith.constant 0 : i32
    %c0_i32_0 = arith.constant 0 : i32
    return %arg1, %c0_i32, %arg0 : i32, i32, i32
  }
  func.func @transform_1(%arg0: i32, %arg1: i32) -> (i32, i32, i32) {
    %c0_i32 = arith.constant 0 : i32
    %c0_i32_0 = arith.constant 0 : i32
    return %arg1, %c0_i32, %arg0 : i32, i32, i32
  }
  func.func @transform_2(%arg0: i32, %arg1: i32) -> (i32, i32) {
    %c0_i32 = arith.constant 0 : i32
    %c0_i32_0 = arith.constant 0 : i32
    %c0_i32_1 = arith.constant 0 : i32
    return %c0_i32, %c0_i32_0 : i32, i32
  }
  func.func @transform_3(%arg0: i32, %arg1: i32) -> (i32, i32) {
    %c0_i32 = arith.constant 0 : i32
    %c0_i32_0 = arith.constant 0 : i32
    %c0_i32_1 = arith.constant 0 : i32
    return %c0_i32, %c0_i32_0 : i32, i32
  }
  func.func @transform_4(%arg0: i32, %arg1: i32) -> (i32, i32) {
    %c0_i32 = arith.constant 0 : i32
    %c0_i32_0 = arith.constant 0 : i32
    %c0_i32_1 = arith.constant 0 : i32
    return %c0_i32, %c0_i32_0 : i32, i32
  }
  func.func @transform_5(%arg0: i32, %arg1: i32) -> (i32, i32) {
    %c0_i32 = arith.constant 0 : i32
    %c0_i32_0 = arith.constant 0 : i32
    %c0_i32_1 = arith.constant 0 : i32
    return %c0_i32, %c0_i32_0 : i32, i32
  }
  func.func @transform_6(%arg0: i32, %arg1: i32) -> (i32, i32, i32) {
    %c0_i32 = arith.constant 0 : i32
    %c0_i32_0 = arith.constant 0 : i32
    return %arg1, %c0_i32, %arg0 : i32, i32, i32
  }
}

</mosaic_0001>

<llo_original>
// kernel: gated_tanh_unit.1
$region0: #{gated_tanh_unit.1}
  #allocation0 [shape = 'u32[]', space=smem, size = 0x4, offset = 0x4, fixed_abs, tag = 'smem constant byte address 0x4 - core index']
  #allocation1 [shape = 'u32[144,128]{1,0:T(1,128)}', space=vmem, size = 0x12000, scoped, tag = 'internal scratch']
  %s0 = inlined_call_operand.vmem [shape: f32[2,8,16], index: 0, kind: input, shape index: {}]
  %s1 = inlined_call_operand.vmem [shape: f32[2,8,16], index: 1, kind: input, shape index: {}]
  %s2 = inlined_call_operand.vmem [shape: f32[4,8], index: 2, kind: input, shape index: {}]
  %s3 = inlined_call_operand.vmem [shape: f32[4,1], index: 3, kind: input, shape index: {}]
  %s4 = inlined_call_operand.vmem [shape: f32[4,8], index: 4, kind: input, shape index: {}]
  %s5 = inlined_call_operand.vmem [shape: f32[4,1], index: 5, kind: input, shape index: {}]
  %s6 = inlined_call_operand.hbm [shape: f32[2,4,16], index: 6, kind: output, shape index: {}]
  %s7 = sld [smem:[#allocation0]]
  $region57: #{gated_tanh_unit.1} parent=0
    _
  %s9 = ssub.s32 1, %s7
  %s10 = scalar_select 0, %s9, %s7
  $region1: #{gated_tanh_unit.1} parent=0
    #allocation2 [shape = 'u8[4096]{0}', space=vmem, size = 0x1000, scoped, tag = 'output window, operand 0']
    #allocation3 [shape = 's32[2]{0}', space=sflag, size = 0x8, scoped, tag = 'scoped memory for gated_tanh_unit.1']
    %11 = vsyncpa [#allocation3], 0
    %s12 = scalar_lea.sflag [#allocation3], 1
    %13 = vsyncpa %s12, 0
    loop: start=0, step=1, limit=4
    $region2: #{gated_tanh_unit.1} parent=1 // loop_pre_header
      _
    $region3: #{gated_tanh_unit.1} parent=1 // loop_header
      %s15 = sphi 0, %s19
      %p16 = scmp.ge.s32.totalorder %s15, 4
      %s22 = sphi 0, %s34
      %s23 = sphi 0, %s30
      %s24 = sphi 0, %s22
      %s25 = sphi 0, %s23
      %s26 = sphi 0, %s24
      %s27 = sphi 0, %s25
      %s39 = sphi 0, %s41
      %s42 = sphi 0, %s39
      %s43 = sphi 0, %s42
      %s59 = sphi 0, %s43
      %s67 = sphi 0, %s69
      %s70 = sphi 0, %s67
      %s71 = sphi 0, %s70
      %s87 = sphi 0, %s71
      %s91 = sphi 0, %s91
      %s93 = sphi 0, %s91
      %s94 = sphi 0, %s93
      %s108 = sphi 0, %s94
      %s112 = sphi 0, %s112
      %s114 = sphi 0, %s112
      %s115 = sphi 0, %s114
      %s129 = sphi 0, %s115
      %s133 = sphi 0, %s133
      %s135 = sphi 0, %s133
      %s136 = sphi 0, %s135
      %s150 = sphi 0, %s136
      %s154 = sphi 0, %s154
      %s156 = sphi 0, %s154
      %s157 = sphi 0, %s156
      %s171 = sphi 0, %s157
      %s179 = sphi 0, %s181
      %s182 = sphi 0, %s179
      %s183 = sphi 0, %s182
      %s199 = sphi 0, %s183
    $region4: #{gated_tanh_unit.1} parent=1 // loop_header_branch
      %18 = sbr.rel (%p16) target = $region8
    $region5: #{gated_tanh_unit.1} parent=1 // loop_body
      %s20 = ssub.s32 %s15, 1
      %s21 = ssub.s32 %s15, 2
      %s28 = sadd.s32 1, %s23
      %p29 = scmp.ge.s32.totalorder %s28, 2
      %s30 = scalar_select %p29, 0, %s28
      %s31 = sadd.s32 1, %s22
      %s32 = scalar_select %p29, %s31, %s22
      %p33 = scmp.ge.s32.totalorder %s32, 1
      %s34 = scalar_select %p33, 0, %s32
      %s35 = ssub.s32 %s23, %s30
      %s36 = ssub.s32 %s22, %s34
      %s37 = sor.u32 %s35, %s36
      %p38 = scmp.eq.s32.totalorder %s37, 0
      %s40 = sadd.s32 %s39, 1
      %s41 = scalar_select %p38, %s39, %s40
      %p44 = pneg %p38
      %p45 = scmp.eq.s32.totalorder %s15, 1
      %p46 = por %p44, %p45
      %p47 = scmp.ne.s32.totalorder %s39, %s42
      %p48 = scmp.eq.s32.totalorder %s15, 0
      %p49 = por %p47, %p48
      %p50 = scmp.ne.s32.totalorder %s39, %s42
      %p51 = scmp.eq.s32.totalorder %s20, 1
      %p52 = por %p50, %p51
      %p53 = scmp.ne.s32.totalorder %s42, %s43
      %p54 = scmp.eq.s32.totalorder %s20, 0
      %p55 = por %p53, %p54
      %p56 = scmp.ne.s32.totalorder %s42, %s43
      %p57 = scmp.eq.s32.totalorder %s21, 1
      %p58 = por %p56, %p57
      %p60 = scmp.ne.s32.totalorder %s43, %s59
      %p61 = scmp.eq.s32.totalorder %s21, 0
      %p62 = por %p60, %p61
      %s63 = ssub.s32 %s23, %s30
      %s64 = ssub.s32 %s22, %s34
      %s65 = sor.u32 %s63, %s64
      %p66 = scmp.eq.s32.totalorder %s65, 0
      %s68 = sadd.s32 %s67, 1
      %s69 = scalar_select %p66, %s67, %s68
      %p72 = pneg %p66
      %p73 = scmp.eq.s32.totalorder %s15, 1
      %p74 = por %p72, %p73
      %p75 = scmp.ne.s32.totalorder %s67, %s70
      %p76 = scmp.eq.s32.totalorder %s15, 0
      %p77 = por %p75, %p76
      %p78 = scmp.ne.s32.totalorder %s67, %s70
      %p79 = scmp.eq.s32.totalorder %s20, 1
      %p80 = por %p78, %p79
      %p81 = scmp.ne.s32.totalorder %s70, %s71
      %p82 = scmp.eq.s32.totalorder %s20, 0
      %p83 = por %p81, %p82
      %p84 = scmp.ne.s32.totalorder %s70, %s71
      %p85 = scmp.eq.s32.totalorder %s21, 1
      %p86 = por %p84, %p85
      %p88 = scmp.ne.s32.totalorder %s71, %s87
      %p89 = scmp.eq.s32.totalorder %s21, 0
      %p90 = por %p88, %p89
      %s92 = sadd.s32 %s91, 1
      %p95 = scmp.eq.s32.totalorder %s15, 1
      %p96 = scmp.ne.s32.totalorder %s91, %s93
      %p97 = scmp.eq.s32.totalorder %s15, 0
      %p98 = por %p96, %p97
      %p99 = scmp.ne.s32.totalorder %s91, %s93
      %p100 = scmp.eq.s32.totalorder %s20, 1
      %p101 = por %p99, %p100
      %p102 = scmp.ne.s32.totalorder %s93, %s94
      %p103 = scmp.eq.s32.totalorder %s20, 0
      %p104 = por %p102, %p103
      %p105 = scmp.ne.s32.totalorder %s93, %s94
      %p106 = scmp.eq.s32.totalorder %s21, 1
      %p107 = por %p105, %p106
      %p109 = scmp.ne.s32.totalorder %s94, %s108
      %p110 = scmp.eq.s32.totalorder %s21, 0
      %p111 = por %p109, %p110
      %s113 = sadd.s32 %s112, 1
      %p116 = scmp.eq.s32.totalorder %s15, 1
      %p117 = scmp.ne.s32.totalorder %s112, %s114
      %p118 = scmp.eq.s32.totalorder %s15, 0
      %p119 = por %p117, %p118
      %p120 = scmp.ne.s32.totalorder %s112, %s114
      %p121 = scmp.eq.s32.totalorder %s20, 1
      %p122 = por %p120, %p121
      %p123 = scmp.ne.s32.totalorder %s114, %s115
      %p124 = scmp.eq.s32.totalorder %s20, 0
      %p125 = por %p123, %p124
      %p126 = scmp.ne.s32.totalorder %s114, %s115
      %p127 = scmp.eq.s32.totalorder %s21, 1
      %p128 = por %p126, %p127
      %p130 = scmp.ne.s32.totalorder %s115, %s129
      %p131 = scmp.eq.s32.totalorder %s21, 0
      %p132 = por %p130, %p131
      %s134 = sadd.s32 %s133, 1
      %p137 = scmp.eq.s32.totalorder %s15, 1
      %p138 = scmp.ne.s32.totalorder %s133, %s135
      %p139 = scmp.eq.s32.totalorder %s15, 0
      %p140 = por %p138, %p139
      %p141 = scmp.ne.s32.totalorder %s133, %s135
      %p142 = scmp.eq.s32.totalorder %s20, 1
      %p143 = por %p141, %p142
      %p144 = scmp.ne.s32.totalorder %s135, %s136
      %p145 = scmp.eq.s32.totalorder %s20, 0
      %p146 = por %p144, %p145
      %p147 = scmp.ne.s32.totalorder %s135, %s136
      %p148 = scmp.eq.s32.totalorder %s21, 1
      %p149 = por %p147, %p148
      %p151 = scmp.ne.s32.totalorder %s136, %s150
      %p152 = scmp.eq.s32.totalorder %s21, 0
      %p153 = por %p151, %p152
      %s155 = sadd.s32 %s154, 1
      %p158 = scmp.eq.s32.totalorder %s15, 1
      %p159 = scmp.ne.s32.totalorder %s154, %s156
      %p160 = scmp.eq.s32.totalorder %s15, 0
      %p161 = por %p159, %p160
      %p162 = scmp.ne.s32.totalorder %s154, %s156
      %p163 = scmp.eq.s32.totalorder %s20, 1
      %p164 = por %p162, %p163
      %p165 = scmp.ne.s32.totalorder %s156, %s157
      %p166 = scmp.eq.s32.totalorder %s20, 0
      %p167 = por %p165, %p166
      %p168 = scmp.ne.s32.totalorder %s156, %s157
      %p169 = scmp.eq.s32.totalorder %s21, 1
      %p170 = por %p168, %p169
      %p172 = scmp.ne.s32.totalorder %s157, %s171
      %p173 = scmp.eq.s32.totalorder %s21, 0
      %p174 = por %p172, %p173
      %s175 = ssub.s32 %s23, %s30
      %s176 = ssub.s32 %s22, %s34
      %s177 = sor.u32 %s175, %s176
      %p178 = scmp.eq.s32.totalorder %s177, 0
      %s180 = sadd.s32 %s179, 1
      %s181 = scalar_select %p178, %s179, %s180
      %p184 = pneg %p178
      %p185 = scmp.eq.s32.totalorder %s15, 1
      %p186 = por %p184, %p185
      %p187 = scmp.ne.s32.totalorder %s179, %s182
      %p188 = scmp.eq.s32.totalorder %s15, 0
      %p189 = por %p187, %p188
      %p190 = scmp.ne.s32.totalorder %s179, %s182
      %p191 = scmp.eq.s32.totalorder %s20, 1
      %p192 = por %p190, %p191
      %p193 = scmp.ne.s32.totalorder %s182, %s183
      %p194 = scmp.eq.s32.totalorder %s20, 0
      %p195 = por %p193, %p194
      %p196 = scmp.ne.s32.totalorder %s182, %s183
      %p197 = scmp.eq.s32.totalorder %s21, 1
      %p198 = por %p196, %p197
      %p200 = scmp.ne.s32.totalorder %s183, %s199
      %p201 = scmp.eq.s32.totalorder %s21, 0
      %p202 = por %p200, %p201
      %p203 = scmp.le.s32.totalorder 1, %s15
      %p204 = scmp.lt.s32.totalorder %s15, 3
      %p205 = pnand %p203, %p204
      %p206 = pneg %p205
      // Predicated region
      $region9: #{gated_tanh_unit.1} parent=5 // pred_check
        _
      $region10: #{gated_tanh_unit.1} parent=5 // pred_check_branch
        %208 = sbr.rel (%p205) target = $region12
      $region11: #{gated_tanh_unit.1} parent=5 // pred_region
        %s209 = ssub.s32 %s15, 1
        // Predicated region
        $region13: #{gated_tanh_unit.1} parent=11 // pred_check
          %p210 = pneg %p104
        $region14: #{gated_tanh_unit.1} parent=11 // pred_check_branch
          %212 = sbr.rel (%p210) target = $region16
        $region15: #{gated_tanh_unit.1} parent=11 // pred_region
          _
        $region16: #{gated_tanh_unit.1} parent=11 // pred_fallthru
          _
        // Predicated region
        $region17: #{gated_tanh_unit.1} parent=11 // pred_check
          %p213 = pneg %p125
        $region18: #{gated_tanh_unit.1} parent=11 // pred_check_branch
          %215 = sbr.rel (%p213) target = $region20
        $region19: #{gated_tanh_unit.1} parent=11 // pred_region
          _
        $region20: #{gated_tanh_unit.1} parent=11 // pred_fallthru
          _
        // Predicated region
        $region21: #{gated_tanh_unit.1} parent=11 // pred_check
          %p216 = pneg %p146
        $region22: #{gated_tanh_unit.1} parent=11 // pred_check_branch
          %218 = sbr.rel (%p216) target = $region24
        $region23: #{gated_tanh_unit.1} parent=11 // pred_region
          _
        $region24: #{gated_tanh_unit.1} parent=11 // pred_fallthru
          _
        // Predicated region
        $region25: #{gated_tanh_unit.1} parent=11 // pred_check
          %p219 = pneg %p167
        $region26: #{gated_tanh_unit.1} parent=11 // pred_check_branch
          %221 = sbr.rel (%p219) target = $region28
        $region27: #{gated_tanh_unit.1} parent=11 // pred_region
          _
        $region28: #{gated_tanh_unit.1} parent=11 // pred_fallthru
          _
      $region12: #{gated_tanh_unit.1} parent=5 // pred_fallthru
        _
      %p222 = scmp.lt.s32.totalorder %s15, 2
      // Predicated region
      $region29: #{gated_tanh_unit.1} parent=5 // pred_check
        %p223 = pneg %p222
      $region30: #{gated_tanh_unit.1} parent=5 // pred_check_branch
        %225 = sbr.rel (%p223) target = $region32
      $region31: #{gated_tanh_unit.1} parent=5 // pred_region
        // Predicated region
        $region33: #{gated_tanh_unit.1} parent=31 // pred_check
          %p226 = pneg %p49
        $region34: #{gated_tanh_unit.1} parent=31 // pred_check_branch
          %228 = sbr.rel (%p226) target = $region36
        $region35: #{gated_tanh_unit.1} parent=31 // pred_region
          %p229 = scmp.lt.s32.totalorder %s23, 1
          %s230 = scalar_select %p229, %s23, 1
          %p231 = scmp.lt.s32.totalorder %s22, 0
          %s232 = scalar_select %p231, %s22, 0
          %s233 = sadd.s32 %s232, %s230
          %s234 = smul.addr %s233, 8
          %s235 = scalar_lea.vmem %s0, %s234
        $region36: #{gated_tanh_unit.1} parent=31 // pred_fallthru
          _
        // Predicated region
        $region37: #{gated_tanh_unit.1} parent=31 // pred_check
          %p236 = pneg %p77
        $region38: #{gated_tanh_unit.1} parent=31 // pred_check_branch
          %238 = sbr.rel (%p236) target = $region40
        $region39: #{gated_tanh_unit.1} parent=31 // pred_region
          %p239 = scmp.lt.s32.totalorder %s23, 1
          %s240 = scalar_select %p239, %s23, 1
          %p241 = scmp.lt.s32.totalorder %s22, 0
          %s242 = scalar_select %p241, %s22, 0
          %s243 = sadd.s32 %s242, %s240
          %s244 = smul.addr %s243, 8
          %s245 = scalar_lea.vmem %s1, %s244
        $region40: #{gated_tanh_unit.1} parent=31 // pred_fallthru
          _
      $region32: #{gated_tanh_unit.1} parent=5 // pred_fallthru
        _
      %p246 = scmp.le.s32.totalorder 1, %s15
      %p247 = scmp.lt.s32.totalorder %s15, 3
      %p248 = pnand %p246, %p247
      %p249 = pneg %p248
      // Predicated region
      $region41: #{gated_tanh_unit.1} parent=5 // pred_check
        _
      $region42: #{gated_tanh_unit.1} parent=5 // pred_check_branch
        %251 = sbr.rel (%p248) target = $region44
      $region43: #{gated_tanh_unit.1} parent=5 // pred_region
        %s252 = ssub.s32 %s15, 1
        %p253 = scmp.lt.s32.totalorder %s25, 1
        %s254 = scalar_select %p253, %s25, 1
        %p255 = scmp.lt.s32.totalorder %s24, 0
        %s256 = scalar_select %p255, %s24, 0
        %s257 = sadd.s32 %s256, %s254
        %s258 = smul.addr %s257, 8
        %s259 = scalar_lea.vmem %s0, %s258
        %p260 = pneg %p55
        %p261 = pneg %p52
        %p262 = scmp.lt.s32.totalorder %s25, 1
        %s263 = scalar_select %p262, %s25, 1
        %p264 = scmp.lt.s32.totalorder %s24, 0
        %s265 = scalar_select %p264, %s24, 0
        %s266 = sadd.s32 %s265, %s263
        %s267 = smul.addr %s266, 8
        %s268 = scalar_lea.vmem %s1, %s267
        %p269 = pneg %p83
        %p270 = pneg %p80
        %p271 = pneg %p104
        %p272 = pneg %p101
        %p273 = pneg %p125
        %p274 = pneg %p122
        %p275 = pneg %p146
        %p276 = pneg %p143
        %p277 = pneg %p167
        %p278 = pneg %p164
        %p279 = pneg %p195
        %p280 = pneg %p192
        %s281 = sand.u32 %s182, 1
        %s282 = scalar_lea.sflag [#allocation3], %s281
        %s283 = sand.u32 %s182, 1
        %s284 = smul.addr %s283, 4
        %s285 = scalar_lea.vmem [#allocation2], %s284
        %p286 = scmp.lt.s32.totalorder %s25, 1
        %s287 = scalar_select %p286, %s25, 1
        %p288 = scmp.lt.s32.totalorder %s24, 0
        %s289 = scalar_select %p288, %s24, 0
        %s290 = sadd.s32 %s289, %s287
        %s291 = smul.addr %s290, 8
        %s292 = scalar_lea.vmem %s0, %s291
        %p293 = scmp.lt.s32.totalorder %s25, 1
        %s294 = scalar_select %p293, %s25, 1
        %p295 = scmp.lt.s32.totalorder %s24, 0
        %s296 = scalar_select %p295, %s24, 0
        %s297 = sadd.s32 %s296, %s294
        %s298 = smul.addr %s297, 8
        %s299 = scalar_lea.vmem %s1, %s298
        %v300 = vld [vmem:[%s292] sm:$0xff]
        %v301 = vld [vmem:[%s299] sm:$0xff]
        %v302 = vld [vmem:[%s2] sm:$0xf]
        %v303 = vld [vmem:[%s3] sm:$0xf]
        %305 = vset.pattern.permute.xlu0 0
        %306 = vperm.xlu0 %305, %v303
        %v307 = vpop.permute.xlu0 %306
        %vm309 = vcmask 64512
        %v311 = vsel %vm309, %v302, 0
        %313 = vmatprep.subr.mxu0 0.0
        %314 = vmatpush1.msra.mxu0 %v300
        %315 = vmatprep.subr.mxu0 0.0
        %316 = vmatpush1.msra.mxu0 0.0
        %317 = vmatprep.subr.mxu0 0.0
        %318 = vmatpush1.msra.mxu0 0.0
        %319 = vmatprep.subr.mxu0 0.0
        %320 = vmatpush1.msra.mxu0 0.0
        %321 = vmatprep.subr.mxu0 0.0
        %322 = vmatpush1.msra.mxu0 0.0
        %323 = vmatprep.subr.mxu0 0.0
        %324 = vmatpush1.msra.mxu0 0.0
        %325 = vmatprep.subr.mxu0 0.0
        %326 = vmatpush1.msra.mxu0 0.0
        %327 = vmatprep.subr.mxu0 0.0
        %328 = vmatpush1.msra.mxu0 0.0
        %329 = vmatprep.subr.mxu0 0.0
        %330 = vmatpush1.msra.mxu0 0.0
        %331 = vmatprep.subr.mxu0 0.0
        %332 = vmatpush1.msra.mxu0 0.0
        %333 = vmatprep.subr.mxu0 0.0
        %334 = vmatpush1.msra.mxu0 0.0
        %335 = vmatprep.subr.mxu0 0.0
        %336 = vmatpush1.msra.mxu0 0.0
        %337 = vmatprep.subr.mxu0 0.0
        %338 = vmatpush1.msra.mxu0 0.0
        %339 = vmatprep.subr.mxu0 0.0
        %340 = vmatpush1.msra.mxu0 0.0
        %341 = vmatprep.subr.mxu0 0.0
        %342 = vmatpush1.msra.mxu0 0.0
        %343 = vmatprep.subr.mxu0 0.0
        %344 = vmatpush1.msra.mxu0 0.0
        %345 = vmatprep.subr.mxu0 0.0
        %346 = vmatpush1.msra.mxu0 0.0
        %347 = vmatprep.subr.mxu0 0.0
        %348 = vmatpush1.msra.mxu0 0.0
        %349 = vmatprep.subr.mxu0 0.0
        %350 = vmatpush1.msra.mxu0 0.0
        %351 = vmatprep.subr.mxu0 0.0
        %352 = vmatpush1.msra.mxu0 0.0
        %353 = vmatprep.subr.mxu0 0.0
        %354 = vmatpush1.msra.mxu0 0.0
        %355 = vmatprep.subr.mxu0 0.0
        %356 = vmatpush1.msra.mxu0 0.0
        %357 = vmatprep.subr.mxu0 0.0
        %358 = vmatpush1.msra.mxu0 0.0
        %359 = vmatprep.subr.mxu0 0.0
        %360 = vmatpush1.msra.mxu0 0.0
        %361 = vmatprep.subr.mxu0 0.0
        %362 = vmatpush1.msra.mxu0 0.0
        %363 = vmatprep.subr.mxu0 0.0
        %364 = vmatpush1.msra.mxu0 0.0
        %365 = vmatprep.subr.mxu0 0.0
        %366 = vmatpush1.msra.mxu0 0.0
        %367 = vmatprep.subr.mxu0 0.0
        %368 = vmatpush1.msra.mxu0 0.0
        %369 = vmatprep.subr.mxu0 0.0
        %370 = vmatpush1.msra.mxu0 0.0
        %371 = vmatprep.subr.mxu0 0.0
        %372 = vmatpush1.msra.mxu0 0.0
        %373 = vmatprep.subr.mxu0 0.0
        %374 = vmatpush1.msra.mxu0 0.0
        %375 = vmatprep.subr.mxu0 0.0
        %376 = vmatpush1.msra.mxu0 0.0
        %377 = vmatprep.mubr.f32.mxu0 0.0
        %378 = vmatmul.mubr.f32.gmra.mrb[0].mxu0 %v311
        %v379 = vpop.f32.mrb[0].mxu0
        %v380 = vadd.f32 %v307, %v379
        %v381 = vpop.f32.mrb[0].mxu0
        %382 = vdwg.mxu0
        %v383 = vld [vmem:[%s4] sm:$0xf]
        %v384 = vld [vmem:[%s5] sm:$0xf]
        %386 = vset.pattern.permute.xlu0 0
        %387 = vperm.xlu0 %386, %v384
        %v388 = vpop.permute.xlu0 %387
        %v391 = vsel %vm309, %v383, 0
        %393 = vmatprep.subr.mxu0 0.0
        %394 = vmatpush1.msra.mxu0 %v301
        %395 = vmatprep.subr.mxu0 0.0
        %396 = vmatpush1.msra.mxu0 0.0
        %397 = vmatprep.subr.mxu0 0.0
        %398 = vmatpush1.msra.mxu0 0.0
        %399 = vmatprep.subr.mxu0 0.0
        %400 = vmatpush1.msra.mxu0 0.0
        %401 = vmatprep.subr.mxu0 0.0
        %402 = vmatpush1.msra.mxu0 0.0
        %403 = vmatprep.subr.mxu0 0.0
        %404 = vmatpush1.msra.mxu0 0.0
        %405 = vmatprep.subr.mxu0 0.0
        %406 = vmatpush1.msra.mxu0 0.0
        %407 = vmatprep.subr.mxu0 0.0
        %408 = vmatpush1.msra.mxu0 0.0
        %409 = vmatprep.subr.mxu0 0.0
        %410 = vmatpush1.msra.mxu0 0.0
        %411 = vmatprep.subr.mxu0 0.0
        %412 = vmatpush1.msra.mxu0 0.0
        %413 = vmatprep.subr.mxu0 0.0
        %414 = vmatpush1.msra.mxu0 0.0
        %415 = vmatprep.subr.mxu0 0.0
        %416 = vmatpush1.msra.mxu0 0.0
        %417 = vmatprep.subr.mxu0 0.0
        %418 = vmatpush1.msra.mxu0 0.0
        %419 = vmatprep.subr.mxu0 0.0
        %420 = vmatpush1.msra.mxu0 0.0
        %421 = vmatprep.subr.mxu0 0.0
        %422 = vmatpush1.msra.mxu0 0.0
        %423 = vmatprep.subr.mxu0 0.0
        %424 = vmatpush1.msra.mxu0 0.0
        %425 = vmatprep.subr.mxu0 0.0
        %426 = vmatpush1.msra.mxu0 0.0
        %427 = vmatprep.subr.mxu0 0.0
        %428 = vmatpush1.msra.mxu0 0.0
        %429 = vmatprep.subr.mxu0 0.0
        %430 = vmatpush1.msra.mxu0 0.0
        %431 = vmatprep.subr.mxu0 0.0
        %432 = vmatpush1.msra.mxu0 0.0
        %433 = vmatprep.subr.mxu0 0.0
        %434 = vmatpush1.msra.mxu0 0.0
        %435 = vmatprep.subr.mxu0 0.0
        %436 = vmatpush1.msra.mxu0 0.0
        %437 = vmatprep.subr.mxu0 0.0
        %438 = vmatpush1.msra.mxu0 0.0
        %439 = vmatprep.subr.mxu0 0.0
        %440 = vmatpush1.msra.mxu0 0.0
        %441 = vmatprep.subr.mxu0 0.0
        %442 = vmatpush1.msra.mxu0 0.0
        %443 = vmatprep.subr.mxu0 0.0
        %444 = vmatpush1.msra.mxu0 0.0
        %445 = vmatprep.subr.mxu0 0.0
        %446 = vmatpush1.msra.mxu0 0.0
        %447 = vmatprep.subr.mxu0 0.0
        %448 = vmatpush1.msra.mxu0 0.0
        %449 = vmatprep.subr.mxu0 0.0
        %450 = vmatpush1.msra.mxu0 0.0
        %451 = vmatprep.subr.mxu0 0.0
        %452 = vmatpush1.msra.mxu0 0.0
        %453 = vmatprep.subr.mxu0 0.0
        %454 = vmatpush1.msra.mxu0 0.0
        %455 = vmatprep.subr.mxu0 0.0
        %456 = vmatpush1.msra.mxu0 0.0
        %457 = vmatprep.mubr.f32.mxu0 0.0
        %458 = vmatmul.mubr.f32.gmra.mrb[0].mxu0 %v391
        %v459 = vpop.f32.mrb[0].mxu0
        %v460 = vadd.f32 %v388, %v459
        %v461 = vpop.f32.mrb[0].mxu0
        %462 = vdwg.mxu0
        %v463 = vmul.f32 %v380, 0.5
        %v464 = vtanh.pop %v463
        %v465 = vadd.f32 %v464, 1.0
        %v466 = vmul.f32 %v465, 0.5
        %v467 = vtanh.pop %v460
        %v468 = vmul.f32 %v466, %v467
        %vm469 = vcmask 125952
        %470 = vst.msk [vmem:[%s285] sm:$0xf] %vm469, %v468
        %s471 = sand.u32 %s182, 1
        %s472 = scalar_lea.sflag [#allocation3], %s471
        %s473 = sand.u32 %s182, 1
        %s474 = smul.addr %s473, 4
        %s475 = scalar_lea.vmem [#allocation2], %s474
        // Predicated region
        $region45: #{gated_tanh_unit.1} parent=43 // pred_check
          %p476 = pneg %p192
        $region46: #{gated_tanh_unit.1} parent=43 // pred_check_branch
          %478 = sbr.rel (%p476) target = $region48
        $region47: #{gated_tanh_unit.1} parent=43 // pred_region
          %s480 = ssub.s32 64, 64
          %481 = vsyncadd %s472, %s480
          %s482 = sadd.s32 %s24, %s25
          %s483 = smul.addr %s482, 64
          %s484 = scalar_lea.hbm %s6, %s483
          %s486 = sshll.u32 %s475, 4
          %s487 = int_to_ptr.vmem [resolvable:$true] %s486
          %489 = dma.vmem_to_hbm [thread:$0]  %s487, 64, %s484, %s472
        $region48: #{gated_tanh_unit.1} parent=43 // pred_fallthru
          _
      $region44: #{gated_tanh_unit.1} parent=5 // pred_fallthru
        _
      %p490 = scmp.le.s32.totalorder 2, %s15
      // Predicated region
      $region49: #{gated_tanh_unit.1} parent=5 // pred_check
        %p491 = pneg %p490
      $region50: #{gated_tanh_unit.1} parent=5 // pred_check_branch
        %493 = sbr.rel (%p491) target = $region52
      $region51: #{gated_tanh_unit.1} parent=5 // pred_region
        %s494 = ssub.s32 %s15, 2
        // Predicated region
        $region53: #{gated_tanh_unit.1} parent=51 // pred_check
          %p495 = pneg %p198
        $region54: #{gated_tanh_unit.1} parent=51 // pred_check_branch
          %497 = sbr.rel (%p495) target = $region56
        $region55: #{gated_tanh_unit.1} parent=51 // pred_region
          %s498 = sand.u32 %s183, 1
          %s499 = scalar_lea.sflag [#allocation3], %s498
          %s500 = sand.u32 %s183, 1
          %s501 = smul.addr %s500, 4
          %s502 = scalar_lea.vmem [#allocation2], %s501
          %503 = dma.done %s499, 64
        $region56: #{gated_tanh_unit.1} parent=51 // pred_fallthru
          _
      $region52: #{gated_tanh_unit.1} parent=5 // pred_fallthru
        _
    $region6: #{gated_tanh_unit.1} parent=1 // loop_footer
      %s19 = sadd.s32 1, %s15
    $region7: #{gated_tanh_unit.1} parent=1 // loop_footer_branch
      %14 = sbr.rel target = $region3
    $region8: #{gated_tanh_unit.1} parent=1 // loop_exit
      _
    %504 = vsyncpa [#allocation3], 1
    %s505 = scalar_lea.sflag [#allocation3], 1
    %506 = vsyncpa %s505, 1

</llo_original>
